<compile_context>
chip_gen: v7x
topology: tpu7x:2x2x1
jax: 0.10.0
libtpu: 0.0.40
codegen_flags: <defaults>
</compile_context>

<pallas_src>
import jax
import jax.numpy as jnp
from jax.experimental import pallas as pl
from jax.experimental.pallas import tpu as pltpu


def attention_kernel(q_ref, k_ref, wa_wt_ref, ua_wt_ref, bias_ref, va_w_ref,
                     ctx_ref, wts_ref):
    TB, S, H = k_ref.shape

    q = q_ref[...]        # (TB, H)    bf16
    keys = k_ref[...]     # (TB, S, H) bf16

    # Wa(query): (TB,H) @ (H,H) on the MXU, f32 accumulate.  The combined
    # (Wa.bias + Ua.bias) is folded in here once instead of twice.
    q_proj = jnp.dot(q, wa_wt_ref[...],
                     preferred_element_type=jnp.float32) + bias_ref[...]

    # Ua(keys): flatten (TB,S) into one M axis so it is a single dense
    # (TB*S,H) @ (H,H) matmul.  With S and H equal to the full array dims the
    # reshape is a sublane-tile relabelling (no data movement).
    k_proj = jnp.dot(keys.reshape(TB * S, H), ua_wt_ref[...],
                     preferred_element_type=jnp.float32).reshape(TB, S, H)

    # Elementwise math stays f32 (v5e has no bf16 VPU/EUP).
    t = jnp.tanh(q_proj[:, None, :] + k_proj)                 # (TB, S, H) f32

    # Va(t): contract the H (lane) axis via multiply + lane reduce — no
    # transpose of the activation, no 1-column matmul.  Va.bias is dropped:
    # a constant added to all scores cancels in the softmax.
    scores = jnp.sum(t * va_w_ref[...], axis=-1)              # (TB, S) f32

    # Softmax over the key axis; approx reciprocal runs on the EUP slot.
    m = jnp.max(scores, axis=-1, keepdims=True)
    e = jnp.exp(scores - m)
    w = e * pl.reciprocal(jnp.sum(e, axis=-1, keepdims=True), approx=True)
    wts_ref[...] = w.astype(wts_ref.dtype)

    # context[b,h] = sum_s w[b,s] * keys[b,s,h]: f32 VPU multiply + sublane
    # (S-axis) reduce on the XLU.  Avoids TB tiny 1-row batched MXU matmuls
    # and keeps the context accumulation fully f32.
    ctx = jnp.sum(w[:, :, None] * keys.astype(jnp.float32), axis=1)  # (TB, H)
    ctx_ref[...] = ctx.astype(ctx_ref.dtype)


def _pick_tb(batch, seq, hidden):
    """Largest batch block: a multiple of 8 (or the full batch) that keeps the
    ~4 live f32 (TB,S,H) intermediates under a ~8 MiB VMEM budget."""
    if batch % 8 != 0:
        return batch                     # block dim == full array dim is legal
    budget_elems = (8 << 20) // (4 * 4)  # ~8 MiB / (4 B/elem * 4 live copies)
    cap = max(8, (budget_elems // max(seq * hidden, 1)) // 8 * 8)
    tb = min(batch, cap)
    while batch % tb:
        tb -= 8
    return tb


def attention_unit(query, keys, params):
    """query (B,1,H) f32, keys (B,S,H) f32 -> (context (B,1,H), weights (B,1,S))."""
    B, _, H = query.shape
    S = keys.shape[1]
    wa_w, wa_b, ua_w, ua_b, va_w, va_b = params
    del va_b  # mathematically dead: cancels in the softmax

    tb = _pick_tb(B, S, H)
    grid = (B // tb,)

    # Pre-transpose projection weights (kernel contracts without .T), combine
    # the two linear biases, and cast MXU operands to bf16 (f32 accumulate in
    # kernel).  The elementwise-path constants (bias, Va.weight) stay f32.
    q2 = query.reshape(B, H).astype(jnp.bfloat16)
    keys_b = keys.astype(jnp.bfloat16)
    wa_wt = wa_w.T.astype(jnp.bfloat16)            # x @ wa_wt == x @ Wa.weight.T
    ua_wt = ua_w.T.astype(jnp.bfloat16)
    bias = (wa_b + ua_b).reshape(1, H).astype(jnp.float32)
    va_w2 = va_w.reshape(1, H).astype(jnp.float32)

    def invariant(shape):
        return pl.BlockSpec(shape, lambda i: (0,) * len(shape))

    grid_spec = pltpu.PrefetchScalarGridSpec(
        num_scalar_prefetch=0,
        grid=grid,
        in_specs=[
            pl.BlockSpec((tb, H), lambda i: (i, 0)),        # query   (B, H)
            pl.BlockSpec((tb, S, H), lambda i: (i, 0, 0)),  # keys    (B, S, H)
            invariant((H, H)),                              # Wa.weight^T
            invariant((H, H)),                              # Ua.weight^T
            invariant((1, H)),                              # Wa.bias + Ua.bias
            invariant((1, H)),                              # Va.weight
        ],
        out_specs=[
            pl.BlockSpec((tb, H), lambda i: (i, 0)),        # context (B, H)
            pl.BlockSpec((tb, S), lambda i: (i, 0)),        # weights (B, S)
        ],
    )

    ctx2, wts2 = pl.pallas_call(
        attention_kernel,
        out_shape=(
            jax.ShapeDtypeStruct((B, H), jnp.float32),
            jax.ShapeDtypeStruct((B, S), jnp.float32),
        ),
        grid_spec=grid_spec,
        compiler_params=pltpu.CompilerParams(
            dimension_semantics=("parallel",)),
    )(q2, keys_b, wa_wt, ua_wt, bias, va_w2)

    # Restore the PyTorch module's output shapes.
    return ctx2.reshape(B, 1, H), wts2.reshape(B, 1, S)


def init_params(key, hidden_size):
    # Deterministic synthetic params matching nn.Linear shapes
    # (uniform in [-1/sqrt(H), 1/sqrt(H)], like PyTorch's default init).
    ks = jax.random.split(key, 6)
    bound = 1.0 / jnp.sqrt(hidden_size)
    u = lambda k, shape: jax.random.uniform(k, shape, jnp.float32, -bound, bound)
    wa_w = u(ks[0], (hidden_size, hidden_size))
    wa_b = u(ks[1], (hidden_size,))
    ua_w = u(ks[2], (hidden_size, hidden_size))
    ua_b = u(ks[3], (hidden_size,))
    va_w = u(ks[4], (1, hidden_size))
    va_b = u(ks[5], (1,))
    return (wa_w, wa_b, ua_w, ua_b, va_w, va_b)


def reference(query, keys, params):
    wa_w, wa_b, ua_w, ua_b, va_w, va_b = params
    qp = query @ wa_w.T + wa_b                     # (B,1,H)
    kp = keys @ ua_w.T + ua_b                      # (B,S,H)
    t = jnp.tanh(qp + kp)                          # (B,S,H)
    scores = (t @ va_w.T + va_b)[..., 0][:, None]  # (B,1,S)
    w = jax.nn.softmax(scores, axis=-1)
    ctx = jnp.einsum("bqs,bsh->bqh", w, keys)
    return ctx, w


if __name__ == "__main__":
    B, S, H = 16, 8, 32
    key = jax.random.PRNGKey(0)
    kq, kk, kp = jax.random.split(key, 3)
    query = jax.random.normal(kq, (B, 1, H), jnp.float32)
    keys = jax.random.normal(kk, (B, S, H), jnp.float32)
    params = init_params(kp, H)

    context, weights = attention_unit(query, keys, params)
    jax.block_until_ready((context, weights))

    ctx_ref, w_ref = reference(query, keys, params)
    # Tolerance relaxed vs the f32 reference because the projection matmul
    # operands are bf16 (accumulation stays f32).
    assert jnp.allclose(weights, w_ref, atol=3e-2, rtol=3e-2), (
        float(jnp.max(jnp.abs(weights - w_ref))))
    assert jnp.allclose(context, ctx_ref, atol=3e-2, rtol=3e-2), (
        float(jnp.max(jnp.abs(context - ctx_ref))))

    print("KERNEL_OK")
</pallas_src>

<mosaic_0001>
module attributes {stable_mosaic.version = 11 : i64} {
  func.func @attention_kernel(%arg0: i32, %arg1: memref<16x32xbf16, #tpu.memory_space<vmem>>, %arg2: memref<16x8x32xbf16, #tpu.memory_space<vmem>>, %arg3: memref<32x32xbf16, #tpu.memory_space<vmem>>, %arg4: memref<32x32xbf16, #tpu.memory_space<vmem>>, %arg5: memref<1x32xf32, #tpu.memory_space<vmem>>, %arg6: memref<1x32xf32, #tpu.memory_space<vmem>>, %arg7: memref<16x32xf32, #tpu.memory_space<vmem>>, %arg8: memref<16x8xf32, #tpu.memory_space<vmem>>) attributes {dimension_semantics = [#tpu.dimension_semantics<parallel>], iteration_bounds = array<i64: 1>, scalar_prefetch = 0 : i64, scratch_operands = 0 : i64, tpu.core_type = #tpu.core_type<tc>, window_params = [{transform_indices = @transform_0, window_bounds = array<i64: 16, 32>}, {transform_indices = @transform_1, window_bounds = array<i64: 16, 8, 32>}, {pipeline_mode = #tpu.pipeline_mode<synchronous>, transform_indices = @transform_2, window_bounds = array<i64: 32, 32>}, {pipeline_mode = #tpu.pipeline_mode<synchronous>, transform_indices = @transform_3, window_bounds = array<i64: 32, 32>}, {pipeline_mode = #tpu.pipeline_mode<synchronous>, transform_indices = @transform_4, window_bounds = array<i64: 1, 32>}, {pipeline_mode = #tpu.pipeline_mode<synchronous>, transform_indices = @transform_5, window_bounds = array<i64: 1, 32>}, {transform_indices = @transform_6, window_bounds = array<i64: 16, 32>}, {transform_indices = @transform_7, window_bounds = array<i64: 16, 8>}]} {
    %c0 = arith.constant 0 : index
    %c0_0 = arith.constant 0 : index
    %0 = vector.load %arg1[%c0, %c0_0] : memref<16x32xbf16, #tpu.memory_space<vmem>>, vector<16x32xbf16>
    %c0_1 = arith.constant 0 : index
    %c0_2 = arith.constant 0 : index
    %c0_3 = arith.constant 0 : index
    %1 = vector.load %arg2[%c0_1, %c0_2, %c0_3] : memref<16x8x32xbf16, #tpu.memory_space<vmem>>, vector<16x8x32xbf16>
    %c0_4 = arith.constant 0 : index
    %c0_5 = arith.constant 0 : index
    %2 = vector.load %arg3[%c0_4, %c0_5] : memref<32x32xbf16, #tpu.memory_space<vmem>>, vector<32x32xbf16>
    %cst = arith.constant dense<0.000000e+00> : vector<16x32xf32>
    %3 = tpu.matmul %0, %2, %cst {dimension_numbers = #tpu.dot_dimension_numbers<[1], [0], [0], [1], [0, 0, 1, 1], [], []>} : vector<16x32xbf16>, vector<32x32xbf16>, vector<16x32xf32> -> vector<16x32xf32>
    %c0_6 = arith.constant 0 : index
    %c0_7 = arith.constant 0 : index
    %4 = vector.load %arg5[%c0_6, %c0_7] : memref<1x32xf32, #tpu.memory_space<vmem>>, vector<1x32xf32>
    %5 = vector.broadcast %4 : vector<1x32xf32> to vector<16x32xf32>
    %6 = arith.addf %3, %5 : vector<16x32xf32>
    %7 = vector.shape_cast %1 : vector<16x8x32xbf16> to vector<128x32xbf16>
    %c0_8 = arith.constant 0 : index
    %c0_9 = arith.constant 0 : index
    %8 = vector.load %arg4[%c0_8, %c0_9] : memref<32x32xbf16, #tpu.memory_space<vmem>>, vector<32x32xbf16>
    %cst_10 = arith.constant dense<0.000000e+00> : vector<128x32xf32>
    %9 = tpu.matmul %7, %8, %cst_10 {dimension_numbers = #tpu.dot_dimension_numbers<[1], [0], [0], [1], [0, 0, 1, 1], [], []>} : vector<128x32xbf16>, vector<32x32xbf16>, vector<128x32xf32> -> vector<128x32xf32>
    %10 = vector.shape_cast %9 : vector<128x32xf32> to vector<16x8x32xf32>
    %11 = vector.shape_cast %6 : vector<16x32xf32> to vector<16x1x32xf32>
    %12 = vector.broadcast %11 : vector<16x1x32xf32> to vector<16x8x32xf32>
    %13 = arith.addf %12, %10 : vector<16x8x32xf32>
    %14 = math.tanh %13 : vector<16x8x32xf32>
    %c0_11 = arith.constant 0 : index
    %c0_12 = arith.constant 0 : index
    %15 = vector.load %arg6[%c0_11, %c0_12] : memref<1x32xf32, #tpu.memory_space<vmem>>, vector<1x32xf32>
    %16 = vector.shape_cast %15 : vector<1x32xf32> to vector<1x1x32xf32>
    %17 = vector.broadcast %16 : vector<1x1x32xf32> to vector<16x8x32xf32>
    %18 = arith.mulf %14, %17 : vector<16x8x32xf32>
    %cst_13 = arith.constant dense<0.000000e+00> : vector<16x8xf32>
    %19 = vector.multi_reduction <add>, %18, %cst_13 [2] : vector<16x8x32xf32> to vector<16x8xf32>
    %cst_14 = arith.constant dense<0xFF800000> : vector<16xf32>
    %20 = vector.multi_reduction <maximumf>, %19, %cst_14 [1] : vector<16x8xf32> to vector<16xf32>
    %21 = vector.shape_cast %20 : vector<16xf32> to vector<16x1xf32>
    %22 = vector.broadcast %21 : vector<16x1xf32> to vector<16x8xf32>
    %23 = arith.subf %19, %22 : vector<16x8xf32>
    %24 = math.exp %23 : vector<16x8xf32>
    %cst_15 = arith.constant dense<0.000000e+00> : vector<16xf32>
    %25 = vector.multi_reduction <add>, %24, %cst_15 [1] : vector<16x8xf32> to vector<16xf32>
    %26 = vector.shape_cast %25 : vector<16xf32> to vector<16x1xf32>
    %27 = tpu.reciprocal %26 {approx = true} : vector<16x1xf32> -> vector<16x1xf32>
    %28 = vector.broadcast %27 : vector<16x1xf32> to vector<16x8xf32>
    %29 = arith.mulf %24, %28 : vector<16x8xf32>
    %c0_16 = arith.constant 0 : index
    %c0_17 = arith.constant 0 : index
    %30 = vector.load %arg8[%c0_16, %c0_17] : memref<16x8xf32, #tpu.memory_space<vmem>>, vector<16x8xf32>
    tpu.vector_store %arg8[%c0_16, %c0_17], %29 {strides = array<i32>} : memref<16x8xf32, #tpu.memory_space<vmem>>, vector<16x8xf32>,
    %31 = vector.shape_cast %29 : vector<16x8xf32> to vector<16x8x1xf32>
    %32 = arith.extf %1 : vector<16x8x32xbf16> to vector<16x8x32xf32>
    %33 = vector.broadcast %31 : vector<16x8x1xf32> to vector<16x8x32xf32>
    %34 = arith.mulf %33, %32 : vector<16x8x32xf32>
    %cst_18 = arith.constant dense<0.000000e+00> : vector<16x32xf32>
    %35 = vector.multi_reduction <add>, %34, %cst_18 [1] : vector<16x8x32xf32> to vector<16x32xf32>
    %c0_19 = arith.constant 0 : index
    %c0_20 = arith.constant 0 : index
    %36 = vector.load %arg7[%c0_19, %c0_20] : memref<16x32xf32, #tpu.memory_space<vmem>>, vector<16x32xf32>
    tpu.vector_store %arg7[%c0_19, %c0_20], %35 {strides = array<i32>} : memref<16x32xf32, #tpu.memory_space<vmem>>, vector<16x32xf32>,
    return
  }
  func.func @transform_0(%arg0: i32) -> (i32, i32) {
    %c0_i32 = arith.constant 0 : i32
    %c0_i32_0 = arith.constant 0 : i32
    return %arg0, %c0_i32 : i32, i32
  }
  func.func @transform_1(%arg0: i32) -> (i32, i32, i32) {
    %c0_i32 = arith.constant 0 : i32
    %c0_i32_0 = arith.constant 0 : i32
    %c0_i32_1 = arith.constant 0 : i32
    return %arg0, %c0_i32, %c0_i32_0 : i32, i32, i32
  }
  func.func @transform_2(%arg0: i32) -> (i32, i32) {
    %c0_i32 = arith.constant 0 : i32
    %c0_i32_0 = arith.constant 0 : i32
    %c0_i32_1 = arith.constant 0 : i32
    return %c0_i32, %c0_i32_0 : i32, i32
  }
  func.func @transform_3(%arg0: i32) -> (i32, i32) {
    %c0_i32 = arith.constant 0 : i32
    %c0_i32_0 = arith.constant 0 : i32
    %c0_i32_1 = arith.constant 0 : i32
    return %c0_i32, %c0_i32_0 : i32, i32
  }
  func.func @transform_4(%arg0: i32) -> (i32, i32) {
    %c0_i32 = arith.constant 0 : i32
    %c0_i32_0 = arith.constant 0 : i32
    %c0_i32_1 = arith.constant 0 : i32
    return %c0_i32, %c0_i32_0 : i32, i32
  }
  func.func @transform_5(%arg0: i32) -> (i32, i32) {
    %c0_i32 = arith.constant 0 : i32
    %c0_i32_0 = arith.constant 0 : i32
    %c0_i32_1 = arith.constant 0 : i32
    return %c0_i32, %c0_i32_0 : i32, i32
  }
  func.func @transform_6(%arg0: i32) -> (i32, i32) {
    %c0_i32 = arith.constant 0 : i32
    %c0_i32_0 = arith.constant 0 : i32
    return %arg0, %c0_i32 : i32, i32
  }
  func.func @transform_7(%arg0: i32) -> (i32, i32) {
    %c0_i32 = arith.constant 0 : i32
    %c0_i32_0 = arith.constant 0 : i32
    return %arg0, %c0_i32 : i32, i32
  }
}

</mosaic_0001>

<llo_original>
// kernel: tpu_custom_call.1
$region0: #{tpu_custom_call.1}
  #allocation0 [shape = 'u32[]', space=smem, size = 0x4, offset = 0x4, fixed_abs, tag = 'smem constant byte address 0x4 - core index']
  #allocation1 [shape = 'u32[144,128]{1,0:T(1,128)}', space=vmem, size = 0x12000, scoped, tag = 'internal scratch']
  %s0 = inlined_call_operand.hbm [shape: bf16[16,32], index: 0, kind: input, shape index: {}]
  %s1 = inlined_call_operand.hbm [shape: bf16[16,8,32], index: 1, kind: input, shape index: {}]
  %s2 = inlined_call_operand.hbm [shape: bf16[32,32], index: 2, kind: input, shape index: {}]
  %s3 = inlined_call_operand.hbm [shape: bf16[32,32], index: 3, kind: input, shape index: {}]
  %s4 = inlined_call_operand.vmem [shape: f32[1,32], index: 4, kind: input, shape index: {}]
  %s5 = inlined_call_operand.vmem [shape: f32[1,32], index: 5, kind: input, shape index: {}]
  %s6 = inlined_call_operand.hbm [shape: f32[16,32], index: 6, kind: output, shape index: {0}]
  %s7 = inlined_call_operand.vmem [shape: f32[16,8], index: 7, kind: output, shape index: {1}]
  %8 = xla_tuple %s6, %s7
  %s9 = sld [smem:[#allocation0]]
  $region58: #{tpu_custom_call.1} parent=0
    _
  %s11 = ssub.s32 1, %s9
  %s12 = scalar_select 0, %s11, %s9
  $region1: #{tpu_custom_call.1} parent=0
    #allocation2 [shape = 'u8[4096]{0}', space=vmem, size = 0x1000, scoped, tag = 'input window, operand 0, single buffered']
    #allocation3 [shape = 's32[1]{0}', space=sflag, size = 0x4, scoped, tag = 'scoped memory for tpu_custom_call.1']
    #allocation4 [shape = 's32[1]{0}', space=sflag, size = 0x4, scoped, tag = 'scoped memory for tpu_custom_call.1']
    #allocation5 [shape = 'u8[32768]{0}', space=vmem, size = 0x8000, scoped, tag = 'input window, operand 1, single buffered']
    #allocation6 [shape = 's32[1]{0}', space=sflag, size = 0x4, scoped, tag = 'scoped memory for tpu_custom_call.1']
    #allocation7 [shape = 'u8[8192]{0}', space=vmem, size = 0x2000, scoped, tag = 'input window, operand 2, single buffered']
    #allocation8 [shape = 'u8[8192]{0}', space=vmem, size = 0x2000, scoped, tag = 'input window, operand 3, single buffered']
    #allocation9 [shape = 's32[1]{0}', space=sflag, size = 0x4, scoped, tag = 'scoped memory for tpu_custom_call.1']
    #allocation10 [shape = 'u8[8192]{0}', space=vmem, size = 0x2000, scoped, tag = 'output window, operand 0, single buffered']
    %13 = vsyncpa [#allocation3], 0
    %14 = vsyncpa [#allocation6], 0
    %15 = vsyncpa [#allocation9], 0
    %16 = vsyncpa [#allocation4], 0
    // Predicated region
    $region2: #{tpu_custom_call.1} parent=1 // pred_check
      _
    $region3: #{tpu_custom_call.1} parent=1 // pred_check_branch
      %18 = sbr.rel (0) target = $region5
    $region4: #{tpu_custom_call.1} parent=1 // pred_region
      %s20 = ssub.s32 128, 128
      %21 = vsyncadd [#allocation3], %s20
      %s22 = sshll.u32 [#allocation2], 4
      %s23 = int_to_ptr.vmem [resolvable:$true] %s22
      %28 = dma.hbm_to_vmem [thread:$0]  %s0, 128, %s23, [#allocation3], 64, 64, 4
    $region5: #{tpu_custom_call.1} parent=1 // pred_fallthru
      _
    // Predicated region
    $region6: #{tpu_custom_call.1} parent=1 // pred_check
      _
    $region7: #{tpu_custom_call.1} parent=1 // pred_check_branch
      %30 = sbr.rel (0) target = $region9
    $region8: #{tpu_custom_call.1} parent=1 // pred_region
      %s32 = ssub.s32 1024, 1024
      %33 = vsyncadd [#allocation6], %s32
      %s34 = sshll.u32 [#allocation5], 4
      %s35 = int_to_ptr.vmem [resolvable:$true] %s34
      %40 = dma.hbm_to_vmem [thread:$0]  %s1, 1024, %s35, [#allocation6], 64, 64, 4
    $region9: #{tpu_custom_call.1} parent=1 // pred_fallthru
      _
    // Predicated region
    $region10: #{tpu_custom_call.1} parent=1 // pred_check
      _
    $region11: #{tpu_custom_call.1} parent=1 // pred_check_branch
      %42 = sbr.rel (0) target = $region13
    $region12: #{tpu_custom_call.1} parent=1 // pred_region
      %s44 = ssub.s32 256, 256
      %45 = vsyncadd [#allocation6], %s44
      %s46 = sshll.u32 [#allocation7], 4
      %s47 = int_to_ptr.vmem [resolvable:$true] %s46
      %52 = dma.hbm_to_vmem [thread:$0]  %s2, 256, %s47, [#allocation6], 64, 64, 4
    $region13: #{tpu_custom_call.1} parent=1 // pred_fallthru
      _
    // Predicated region
    $region14: #{tpu_custom_call.1} parent=1 // pred_check
      _
    $region15: #{tpu_custom_call.1} parent=1 // pred_check_branch
      %54 = sbr.rel (0) target = $region17
    $region16: #{tpu_custom_call.1} parent=1 // pred_region
      %s56 = ssub.s32 256, 256
      %57 = vsyncadd [#allocation9], %s56
      %s58 = sshll.u32 [#allocation8], 4
      %s59 = int_to_ptr.vmem [resolvable:$true] %s58
      %64 = dma.hbm_to_vmem [thread:$0]  %s3, 256, %s59, [#allocation9], 64, 64, 4
    $region17: #{tpu_custom_call.1} parent=1 // pred_fallthru
      _
    // Predicated region
    $region18: #{tpu_custom_call.1} parent=1 // pred_check
      _
    $region19: #{tpu_custom_call.1} parent=1 // pred_check_branch
      %66 = sbr.rel (0) target = $region21
    $region20: #{tpu_custom_call.1} parent=1 // pred_region
      _
    $region21: #{tpu_custom_call.1} parent=1 // pred_fallthru
      _
    // Predicated region
    $region22: #{tpu_custom_call.1} parent=1 // pred_check
      _
    $region23: #{tpu_custom_call.1} parent=1 // pred_check_branch
      %68 = sbr.rel (0) target = $region25
    $region24: #{tpu_custom_call.1} parent=1 // pred_region
      _
    $region25: #{tpu_custom_call.1} parent=1 // pred_fallthru
      _
    // Predicated region
    $region26: #{tpu_custom_call.1} parent=1 // pred_check
      _
    $region27: #{tpu_custom_call.1} parent=1 // pred_check_branch
      %70 = sbr.rel (0) target = $region29
    $region28: #{tpu_custom_call.1} parent=1 // pred_region
      %71 = dma.done [#allocation3], 128
    $region29: #{tpu_custom_call.1} parent=1 // pred_fallthru
      _
    // Predicated region
    $region30: #{tpu_custom_call.1} parent=1 // pred_check
      _
    $region31: #{tpu_custom_call.1} parent=1 // pred_check_branch
      %73 = sbr.rel (0) target = $region33
    $region32: #{tpu_custom_call.1} parent=1 // pred_region
      %74 = dma.done [#allocation6], 1024
    $region33: #{tpu_custom_call.1} parent=1 // pred_fallthru
      _
    // Predicated region
    $region34: #{tpu_custom_call.1} parent=1 // pred_check
      _
    $region35: #{tpu_custom_call.1} parent=1 // pred_check_branch
      %76 = sbr.rel (0) target = $region37
    $region36: #{tpu_custom_call.1} parent=1 // pred_region
      %77 = dma.done [#allocation6], 256
    $region37: #{tpu_custom_call.1} parent=1 // pred_fallthru
      _
    // Predicated region
    $region38: #{tpu_custom_call.1} parent=1 // pred_check
      _
    $region39: #{tpu_custom_call.1} parent=1 // pred_check_branch
      %79 = sbr.rel (0) target = $region41
    $region40: #{tpu_custom_call.1} parent=1 // pred_region
      %80 = dma.done [#allocation9], 256
    $region41: #{tpu_custom_call.1} parent=1 // pred_fallthru
      _
    %v82 = vld [vmem:[#allocation2] sm:$0xf]
    %v83 = vld [vmem:[#allocation2 + $0x4] sm:$0xf]
    %v84 = vld [vmem:[#allocation5] sm:$0xf]
    %v85 = vld [vmem:[#allocation5 + $0x4] sm:$0xf]
    %v86 = vld [vmem:[#allocation5 + $0x8] sm:$0xf]
    %v87 = vld [vmem:[#allocation5 + $0xc] sm:$0xf]
    %v88 = vld [vmem:[#allocation5 + $0x10] sm:$0xf]
    %v89 = vld [vmem:[#allocation5 + $0x14] sm:$0xf]
    %v90 = vld [vmem:[#allocation5 + $0x18] sm:$0xf]
    %v91 = vld [vmem:[#allocation5 + $0x1c] sm:$0xf]
    %v92 = vld [vmem:[#allocation5 + $0x20] sm:$0xf]
    %v93 = vld [vmem:[#allocation5 + $0x24] sm:$0xf]
    %v94 = vld [vmem:[#allocation5 + $0x28] sm:$0xf]
    %v95 = vld [vmem:[#allocation5 + $0x2c] sm:$0xf]
    %v96 = vld [vmem:[#allocation5 + $0x30] sm:$0xf]
    %v97 = vld [vmem:[#allocation5 + $0x34] sm:$0xf]
    %v98 = vld [vmem:[#allocation5 + $0x38] sm:$0xf]
    %v99 = vld [vmem:[#allocation5 + $0x3c] sm:$0xf]
    %v100 = vld [vmem:[#allocation7] sm:$0xf]
    %v101 = vld [vmem:[#allocation7 + $0x4] sm:$0xf]
    %v102 = vld [vmem:[#allocation7 + $0x8] sm:$0xf]
    %v103 = vld [vmem:[#allocation7 + $0xc] sm:$0xf]
    %v104 = vld [vmem:[%s4] sm:$0x1]
    %v106 = vlaneseq
    %v107 = vshrl.u32 %v106, 7
    %v108 = vsub.s32 0, %v107
    %v109 = vrot.slane %v104, %v108
    %v113 = vunpack.c.l.b16 %v82
    %v114 = vunpack.c.l.b16 %v83
    %v115 = vpack.c.b16 %v114, %v113
    %v120 = vunpack.c.l.b16 %v100
    %v121 = vunpack.c.l.b16 %v101
    %v122 = vunpack.c.l.b16 %v102
    %v123 = vunpack.c.l.b16 %v103
    %v124 = vpack.c.b16 %v121, %v120
    %v125 = vpack.c.b16 %v123, %v122
    %vm128 = vcmask 261120
    %v130 = vsel %vm128, %v115, 0
    %132 = vmatprep.subr.bf16.mxu0 0
    %133 = vmatpush1.bf16.msra.mxu0 %v124
    %134 = vmatprep.subr.bf16.mxu0 0
    %135 = vmatpush1.bf16.msra.mxu0 %v125
    %136 = vmatprep.subr.bf16.mxu0 0
    %137 = vmatpush1.bf16.msra.mxu0 0
    %138 = vmatprep.subr.bf16.mxu0 0
    %139 = vmatpush1.bf16.msra.mxu0 0
    %140 = vmatprep.subr.bf16.mxu0 0
    %141 = vmatpush1.bf16.msra.mxu0 0
    %142 = vmatprep.subr.bf16.mxu0 0
    %143 = vmatpush1.bf16.msra.mxu0 0
    %144 = vmatprep.subr.bf16.mxu0 0
    %145 = vmatpush1.bf16.msra.mxu0 0
    %146 = vmatprep.subr.bf16.mxu0 0
    %147 = vmatpush1.bf16.msra.mxu0 0
    %148 = vmatprep.subr.bf16.mxu0 0
    %149 = vmatpush1.bf16.msra.mxu0 0
    %150 = vmatprep.subr.bf16.mxu0 0
    %151 = vmatpush1.bf16.msra.mxu0 0
    %152 = vmatprep.subr.bf16.mxu0 0
    %153 = vmatpush1.bf16.msra.mxu0 0
    %154 = vmatprep.subr.bf16.mxu0 0
    %155 = vmatpush1.bf16.msra.mxu0 0
    %156 = vmatprep.subr.bf16.mxu0 0
    %157 = vmatpush1.bf16.msra.mxu0 0
    %158 = vmatprep.subr.bf16.mxu0 0
    %159 = vmatpush1.bf16.msra.mxu0 0
    %160 = vmatprep.subr.bf16.mxu0 0
    %161 = vmatpush1.bf16.msra.mxu0 0
    %162 = vmatprep.subr.bf16.mxu0 0
    %163 = vmatpush1.bf16.msra.mxu0 0
    %164 = vmatprep.mubr.bf16.mxu0 0
    %165 = vmatmul.mubr.bf16.gmra.mrb[0].mxu0 %v130
    %v166 = vpop.f32.mrb[0].mxu0
    %v167 = vadd.f32 %v109, %v166
    %v168 = vpop.f32.mrb[0].mxu0
    %v169 = vpop.f32.mrb[0].mxu0
    %v170 = vadd.f32 %v109, %v169
    %v171 = vpop.f32.mrb[0].mxu0
    %172 = vdwg.mxu0
    %v173 = vld [vmem:[#allocation8] sm:$0xf]
    %v174 = vld [vmem:[#allocation8 + $0x4] sm:$0xf]
    %v175 = vld [vmem:[#allocation8 + $0x8] sm:$0xf]
    %v176 = vld [vmem:[#allocation8 + $0xc] sm:$0xf]
    %v193 = vunpack.c.l.b16 %v84
    %v194 = vunpack.c.l.b16 %v85
    %v195 = vunpack.c.l.b16 %v86
    %v196 = vunpack.c.l.b16 %v87
    %v197 = vunpack.c.l.b16 %v88
    %v198 = vunpack.c.l.b16 %v89
    %v199 = vunpack.c.l.b16 %v90
    %v200 = vunpack.c.l.b16 %v91
    %v201 = vunpack.c.l.b16 %v92
    %v202 = vunpack.c.l.b16 %v93
    %v203 = vunpack.c.l.b16 %v94
    %v204 = vunpack.c.l.b16 %v95
    %v205 = vunpack.c.l.b16 %v96
    %v206 = vunpack.c.l.b16 %v97
    %v207 = vunpack.c.l.b16 %v98
    %v208 = vunpack.c.l.b16 %v99
    %v209 = vpack.c.b16 %v194, %v193
    %v210 = vpack.c.b16 %v196, %v195
    %v211 = vpack.c.b16 %v198, %v197
    %v212 = vpack.c.b16 %v200, %v199
    %v213 = vpack.c.b16 %v202, %v201
    %v214 = vpack.c.b16 %v204, %v203
    %v215 = vpack.c.b16 %v206, %v205
    %v216 = vpack.c.b16 %v208, %v207
    %v221 = vunpack.c.l.b16 %v173
    %v222 = vunpack.c.l.b16 %v174
    %v223 = vunpack.c.l.b16 %v175
    %v224 = vunpack.c.l.b16 %v176
    %v225 = vpack.c.b16 %v222, %v221
    %v226 = vpack.c.b16 %v224, %v223
    %v230 = vsel %vm128, %v209, 0
    %v233 = vsel %vm128, %v210, 0
    %v236 = vsel %vm128, %v211, 0
    %v239 = vsel %vm128, %v212, 0
    %v242 = vsel %vm128, %v213, 0
    %v245 = vsel %vm128, %v214, 0
    %v248 = vsel %vm128, %v215, 0
    %v251 = vsel %vm128, %v216, 0
    %253 = vmatprep.subr.bf16.mxu0 0
    %254 = vmatpush1.bf16.msra.mxu0 %v225
    %255 = vmatprep.subr.bf16.mxu0 0
    %256 = vmatpush1.bf16.msra.mxu0 %v226
    %257 = vmatprep.subr.bf16.mxu0 0
    %258 = vmatpush1.bf16.msra.mxu0 0
    %259 = vmatprep.subr.bf16.mxu0 0
    %260 = vmatpush1.bf16.msra.mxu0 0
    %261 = vmatprep.subr.bf16.mxu0 0
    %262 = vmatpush1.bf16.msra.mxu0 0
    %263 = vmatprep.subr.bf16.mxu0 0
    %264 = vmatpush1.bf16.msra.mxu0 0
    %265 = vmatprep.subr.bf16.mxu0 0
    %266 = vmatpush1.bf16.msra.mxu0 0
    %267 = vmatprep.subr.bf16.mxu0 0
    %268 = vmatpush1.bf16.msra.mxu0 0
    %269 = vmatprep.subr.bf16.mxu0 0
    %270 = vmatpush1.bf16.msra.mxu0 0
    %271 = vmatprep.subr.bf16.mxu0 0
    %272 = vmatpush1.bf16.msra.mxu0 0
    %273 = vmatprep.subr.bf16.mxu0 0
    %274 = vmatpush1.bf16.msra.mxu0 0
    %275 = vmatprep.subr.bf16.mxu0 0
    %276 = vmatpush1.bf16.msra.mxu0 0
    %277 = vmatprep.subr.bf16.mxu0 0
    %278 = vmatpush1.bf16.msra.mxu0 0
    %279 = vmatprep.subr.bf16.mxu0 0
    %280 = vmatpush1.bf16.msra.mxu0 0
    %281 = vmatprep.subr.bf16.mxu0 0
    %282 = vmatpush1.bf16.msra.mxu0 0
    %283 = vmatprep.subr.bf16.mxu0 0
    %284 = vmatpush1.bf16.msra.mxu0 0
    %285 = vmatprep.mubr.bf16.mxu0 0
    %286 = vmatmul.mubr.bf16.gmra.mrb[0].mxu0 %v230
    %v287 = vpop.f32.mrb[0].mxu0
    %v288 = vadd.f32 0.0, %v287
    %v289 = vpop.f32.mrb[0].mxu0
    %v290 = vpop.f32.mrb[0].mxu0
    %v291 = vadd.f32 0.0, %v290
    %v292 = vpop.f32.mrb[0].mxu0
    %293 = vmatprep.mubr.bf16.mxu0 0
    %294 = vmatmul.mubr.bf16.gmra.mrb[0].mxu0 %v233
    %v295 = vpop.f32.mrb[0].mxu0
    %v296 = vadd.f32 0.0, %v295
    %v297 = vpop.f32.mrb[0].mxu0
    %v298 = vpop.f32.mrb[0].mxu0
    %v299 = vadd.f32 0.0, %v298
    %v300 = vpop.f32.mrb[0].mxu0
    %301 = vmatprep.mubr.bf16.mxu0 0
    %302 = vmatmul.mubr.bf16.gmra.mrb[0].mxu0 %v236
    %v303 = vpop.f32.mrb[0].mxu0
    %v304 = vadd.f32 0.0, %v303
    %v305 = vpop.f32.mrb[0].mxu0
    %v306 = vpop.f32.mrb[0].mxu0
    %v307 = vadd.f32 0.0, %v306
    %v308 = vpop.f32.mrb[0].mxu0
    %309 = vmatprep.mubr.bf16.mxu0 0
    %310 = vmatmul.mubr.bf16.gmra.mrb[0].mxu0 %v239
    %v311 = vpop.f32.mrb[0].mxu0
    %v312 = vadd.f32 0.0, %v311
    %v313 = vpop.f32.mrb[0].mxu0
    %v314 = vpop.f32.mrb[0].mxu0
    %v315 = vadd.f32 0.0, %v314
    %v316 = vpop.f32.mrb[0].mxu0
    %317 = vmatprep.mubr.bf16.mxu0 0
    %318 = vmatmul.mubr.bf16.gmra.mrb[0].mxu0 %v242
    %v319 = vpop.f32.mrb[0].mxu0
    %v320 = vadd.f32 0.0, %v319
    %v321 = vpop.f32.mrb[0].mxu0
    %v322 = vpop.f32.mrb[0].mxu0
    %v323 = vadd.f32 0.0, %v322
    %v324 = vpop.f32.mrb[0].mxu0
    %325 = vmatprep.mubr.bf16.mxu0 0
    %326 = vmatmul.mubr.bf16.gmra.mrb[0].mxu0 %v245
    %v327 = vpop.f32.mrb[0].mxu0
    %v328 = vadd.f32 0.0, %v327
    %v329 = vpop.f32.mrb[0].mxu0
    %v330 = vpop.f32.mrb[0].mxu0
    %v331 = vadd.f32 0.0, %v330
    %v332 = vpop.f32.mrb[0].mxu0
    %333 = vmatprep.mubr.bf16.mxu0 0
    %334 = vmatmul.mubr.bf16.gmra.mrb[0].mxu0 %v248
    %v335 = vpop.f32.mrb[0].mxu0
    %v336 = vadd.f32 0.0, %v335
    %v337 = vpop.f32.mrb[0].mxu0
    %v338 = vpop.f32.mrb[0].mxu0
    %v339 = vadd.f32 0.0, %v338
    %v340 = vpop.f32.mrb[0].mxu0
    %341 = vmatprep.mubr.bf16.mxu0 0
    %342 = vmatmul.mubr.bf16.gmra.mrb[0].mxu0 %v251
    %v343 = vpop.f32.mrb[0].mxu0
    %v344 = vadd.f32 0.0, %v343
    %v345 = vpop.f32.mrb[0].mxu0
    %v346 = vpop.f32.mrb[0].mxu0
    %v347 = vadd.f32 0.0, %v346
    %v348 = vpop.f32.mrb[0].mxu0
    %349 = vdwg.mxu0
    %v352 = vcombine.high %v167, %v167
    %v354 = vunpack.c.l.s4 1966171168
    %v355 = vunpack.c.0.s8 %v354
    %v356 = vlaneseq
    %v357 = vshrl.u32 %v356, 7
    %v358 = vsub.s32 %v355, %v357
    %v359 = vrot.slane %v167, %v358
    %v361 = vunpack.c.l.s4 1966171168
    %v362 = vunpack.c.0.s8 %v361
    %v363 = vlaneseq
    %v364 = vshrl.u32 %v363, 7
    %v365 = vsub.s32 %v362, %v364
    %v366 = vrot.slane %v352, %v365
    %v367 = vcombine.high %v359, %v359
    %v368 = vcombine.high %v366, %v366
    %v370 = vunpack.c.l.s4 1966171168
    %v371 = vunpack.c.0.s8 %v370
    %v372 = vlaneseq
    %v373 = vshrl.u32 %v372, 7
    %v374 = vsub.s32 %v371, %v373
    %v375 = vrot.slane %v359, %v374
    %v377 = vunpack.c.l.s4 1966171168
    %v378 = vunpack.c.0.s8 %v377
    %v379 = vlaneseq
    %v380 = vshrl.u32 %v379, 7
    %v381 = vsub.s32 %v378, %v380
    %v382 = vrot.slane %v366, %v381
    %v384 = vunpack.c.l.s4 1966171168
    %v385 = vunpack.c.0.s8 %v384
    %v386 = vlaneseq
    %v387 = vshrl.u32 %v386, 7
    %v388 = vsub.s32 %v385, %v387
    %v389 = vrot.slane %v367, %v388
    %v391 = vunpack.c.l.s4 1966171168
    %v392 = vunpack.c.0.s8 %v391
    %v393 = vlaneseq
    %v394 = vshrl.u32 %v393, 7
    %v395 = vsub.s32 %v392, %v394
    %v396 = vrot.slane %v368, %v395
    %v397 = vcombine.high %v375, %v375
    %v398 = vcombine.high %v382, %v382
    %v399 = vcombine.high %v389, %v389
    %v400 = vcombine.high %v396, %v396
    %v401 = vcombine.high %v170, %v170
    %v403 = vunpack.c.l.s4 1966171168
    %v404 = vunpack.c.0.s8 %v403
    %v405 = vlaneseq
    %v406 = vshrl.u32 %v405, 7
    %v407 = vsub.s32 %v404, %v406
    %v408 = vrot.slane %v170, %v407
    %v410 = vunpack.c.l.s4 1966171168
    %v411 = vunpack.c.0.s8 %v410
    %v412 = vlaneseq
    %v413 = vshrl.u32 %v412, 7
    %v414 = vsub.s32 %v411, %v413
    %v415 = vrot.slane %v401, %v414
    %v416 = vcombine.high %v408, %v408
    %v417 = vcombine.high %v415, %v415
    %v419 = vunpack.c.l.s4 1966171168
    %v420 = vunpack.c.0.s8 %v419
    %v421 = vlaneseq
    %v422 = vshrl.u32 %v421, 7
    %v423 = vsub.s32 %v420, %v422
    %v424 = vrot.slane %v408, %v423
    %v426 = vunpack.c.l.s4 1966171168
    %v427 = vunpack.c.0.s8 %v426
    %v428 = vlaneseq
    %v429 = vshrl.u32 %v428, 7
    %v430 = vsub.s32 %v427, %v429
    %v431 = vrot.slane %v415, %v430
    %v433 = vunpack.c.l.s4 1966171168
    %v434 = vunpack.c.0.s8 %v433
    %v435 = vlaneseq
    %v436 = vshrl.u32 %v435, 7
    %v437 = vsub.s32 %v434, %v436
    %v438 = vrot.slane %v416, %v437
    %v440 = vunpack.c.l.s4 1966171168
    %v441 = vunpack.c.0.s8 %v440
    %v442 = vlaneseq
    %v443 = vshrl.u32 %v442, 7
    %v444 = vsub.s32 %v441, %v443
    %v445 = vrot.slane %v417, %v444
    %v446 = vcombine.high %v424, %v424
    %v447 = vcombine.high %v431, %v431
    %v448 = vcombine.high %v438, %v438
    %v449 = vcombine.high %v445, %v445
    %v450 = vlaneseq
    %v451 = vshrl.u32 %v450, 7
    %v452 = vsub.s32 0, %v451
    %v453 = vrot.slane %v375, %v452
    %v454 = vlaneseq
    %v455 = vshrl.u32 %v454, 7
    %v456 = vsub.s32 0, %v455
    %v457 = vrot.slane %v389, %v456
    %v458 = vlaneseq
    %v459 = vshrl.u32 %v458, 7
    %v460 = vsub.s32 0, %v459
    %v461 = vrot.slane %v397, %v460
    %v462 = vlaneseq
    %v463 = vshrl.u32 %v462, 7
    %v464 = vsub.s32 0, %v463
    %v465 = vrot.slane %v399, %v464
    %v466 = vlaneseq
    %v467 = vshrl.u32 %v466, 7
    %v468 = vsub.s32 0, %v467
    %v469 = vrot.slane %v382, %v468
    %v470 = vlaneseq
    %v471 = vshrl.u32 %v470, 7
    %v472 = vsub.s32 0, %v471
    %v473 = vrot.slane %v396, %v472
    %v474 = vlaneseq
    %v475 = vshrl.u32 %v474, 7
    %v476 = vsub.s32 0, %v475
    %v477 = vrot.slane %v398, %v476
    %v478 = vlaneseq
    %v479 = vshrl.u32 %v478, 7
    %v480 = vsub.s32 0, %v479
    %v481 = vrot.slane %v400, %v480
    %v482 = vlaneseq
    %v483 = vshrl.u32 %v482, 7
    %v484 = vsub.s32 0, %v483
    %v485 = vrot.slane %v424, %v484
    %v486 = vlaneseq
    %v487 = vshrl.u32 %v486, 7
    %v488 = vsub.s32 0, %v487
    %v489 = vrot.slane %v438, %v488
    %v490 = vlaneseq
    %v491 = vshrl.u32 %v490, 7
    %v492 = vsub.s32 0, %v491
    %v493 = vrot.slane %v446, %v492
    %v494 = vlaneseq
    %v495 = vshrl.u32 %v494, 7
    %v496 = vsub.s32 0, %v495
    %v497 = vrot.slane %v448, %v496
    %v498 = vlaneseq
    %v499 = vshrl.u32 %v498, 7
    %v500 = vsub.s32 0, %v499
    %v501 = vrot.slane %v431, %v500
    %v502 = vlaneseq
    %v503 = vshrl.u32 %v502, 7
    %v504 = vsub.s32 0, %v503
    %v505 = vrot.slane %v445, %v504
    %v506 = vlaneseq
    %v507 = vshrl.u32 %v506, 7
    %v508 = vsub.s32 0, %v507
    %v509 = vrot.slane %v447, %v508
    %v510 = vlaneseq
    %v511 = vshrl.u32 %v510, 7
    %v512 = vsub.s32 0, %v511
    %v513 = vrot.slane %v449, %v512
    %v530 = vadd.f32 %v453, %v288
    %v531 = vadd.f32 %v457, %v291
    %v532 = vadd.f32 %v461, %v296
    %v533 = vadd.f32 %v465, %v299
    %v534 = vadd.f32 %v469, %v304
    %v535 = vadd.f32 %v473, %v307
    %v536 = vadd.f32 %v477, %v312
    %v537 = vadd.f32 %v481, %v315
    %v538 = vadd.f32 %v485, %v320
    %v539 = vadd.f32 %v489, %v323
    %v540 = vadd.f32 %v493, %v328
    %v541 = vadd.f32 %v497, %v331
    %v542 = vadd.f32 %v501, %v336
    %v543 = vadd.f32 %v505, %v339
    %v544 = vadd.f32 %v509, %v344
    %v545 = vadd.f32 %v513, %v347
    %v546 = vtanh.pop %v530
    %v547 = vtanh.pop %v531
    %v548 = vtanh.pop %v532
    %v549 = vtanh.pop %v533
    %v550 = vtanh.pop %v534
    %v551 = vtanh.pop %v535
    %v552 = vtanh.pop %v536
    %v553 = vtanh.pop %v537
    %v554 = vtanh.pop %v538
    %v555 = vtanh.pop %v539
    %v556 = vtanh.pop %v540
    %v557 = vtanh.pop %v541
    %v558 = vtanh.pop %v542
    %v559 = vtanh.pop %v543
    %v560 = vtanh.pop %v544
    %v561 = vtanh.pop %v545
    %v562 = vld [vmem:[%s5] sm:$0x1]
    %v564 = vlaneseq
    %v565 = vshrl.u32 %v564, 7
    %v566 = vsub.s32 0, %v565
    %v567 = vrot.slane %v562, %v566
    %v569 = vmul.f32 %v546, %v567
    %v570 = vmul.f32 %v547, %v567
    %v571 = vmul.f32 %v548, %v567
    %v572 = vmul.f32 %v549, %v567
    %v573 = vmul.f32 %v550, %v567
    %v574 = vmul.f32 %v551, %v567
    %v575 = vmul.f32 %v552, %v567
    %v576 = vmul.f32 %v553, %v567
    %v577 = vmul.f32 %v554, %v567
    %v578 = vmul.f32 %v555, %v567
    %v579 = vmul.f32 %v556, %v567
    %v580 = vmul.f32 %v557, %v567
    %v581 = vmul.f32 %v558, %v567
    %v582 = vmul.f32 %v559, %v567
    %v583 = vmul.f32 %v560, %v567
    %v584 = vmul.f32 %v561, %v567
    %v585 = vsel %vm128, %v569, 0.0
    %586 = vadd.xlane.f32.xlu0 %v585
    %v587 = vpop.xlane.xlu0 %586
    %v588 = vsel %vm128, %v570, 0.0
    %589 = vadd.xlane.f32.xlu0 %v588
    %v590 = vpop.xlane.xlu0 %589
    %v591 = vsel %vm128, %v571, 0.0
    %592 = vadd.xlane.f32.xlu0 %v591
    %v593 = vpop.xlane.xlu0 %592
    %v594 = vsel %vm128, %v572, 0.0
    %595 = vadd.xlane.f32.xlu0 %v594
    %v596 = vpop.xlane.xlu0 %595
    %v597 = vsel %vm128, %v573, 0.0
    %598 = vadd.xlane.f32.xlu0 %v597
    %v599 = vpop.xlane.xlu0 %598
    %v600 = vsel %vm128, %v574, 0.0
    %601 = vadd.xlane.f32.xlu0 %v600
    %v602 = vpop.xlane.xlu0 %601
    %v603 = vsel %vm128, %v575, 0.0
    %604 = vadd.xlane.f32.xlu0 %v603
    %v605 = vpop.xlane.xlu0 %604
    %v606 = vsel %vm128, %v576, 0.0
    %607 = vadd.xlane.f32.xlu0 %v606
    %v608 = vpop.xlane.xlu0 %607
    %v609 = vsel %vm128, %v577, 0.0
    %610 = vadd.xlane.f32.xlu0 %v609
    %v611 = vpop.xlane.xlu0 %610
    %v612 = vsel %vm128, %v578, 0.0
    %613 = vadd.xlane.f32.xlu0 %v612
    %v614 = vpop.xlane.xlu0 %613
    %v615 = vsel %vm128, %v579, 0.0
    %616 = vadd.xlane.f32.xlu0 %v615
    %v617 = vpop.xlane.xlu0 %616
    %v618 = vsel %vm128, %v580, 0.0
    %619 = vadd.xlane.f32.xlu0 %v618
    %v620 = vpop.xlane.xlu0 %619
    %v621 = vsel %vm128, %v581, 0.0
    %622 = vadd.xlane.f32.xlu0 %v621
    %v623 = vpop.xlane.xlu0 %622
    %v624 = vsel %vm128, %v582, 0.0
    %625 = vadd.xlane.f32.xlu0 %v624
    %v626 = vpop.xlane.xlu0 %625
    %v627 = vsel %vm128, %v583, 0.0
    %628 = vadd.xlane.f32.xlu0 %v627
    %v629 = vpop.xlane.xlu0 %628
    %v630 = vsel %vm128, %v584, 0.0
    %631 = vadd.xlane.f32.xlu0 %v630
    %v632 = vpop.xlane.xlu0 %631
    %v649 = vlaneseq
    %v650 = vand.u32 %v649, 127
    %v651 = vlaneseq
    %v652 = vshrl.u32 %v651, 7
    %v653 = vsub.s32 %v650, %v652
    %v654 = vrot.slane %v587, %v653
    %v655 = vlaneseq
    %v656 = vshrl.u32 %v655, 7
    %v657 = vsub.s32 %v650, %v656
    %v658 = vrot.slane %v590, %v657
    %v659 = vlaneseq
    %v660 = vshrl.u32 %v659, 7
    %v661 = vsub.s32 %v650, %v660
    %v662 = vrot.slane %v593, %v661
    %v663 = vlaneseq
    %v664 = vshrl.u32 %v663, 7
    %v665 = vsub.s32 %v650, %v664
    %v666 = vrot.slane %v596, %v665
    %v667 = vlaneseq
    %v668 = vshrl.u32 %v667, 7
    %v669 = vsub.s32 %v650, %v668
    %v670 = vrot.slane %v599, %v669
    %v671 = vlaneseq
    %v672 = vshrl.u32 %v671, 7
    %v673 = vsub.s32 %v650, %v672
    %v674 = vrot.slane %v602, %v673
    %v675 = vlaneseq
    %v676 = vshrl.u32 %v675, 7
    %v677 = vsub.s32 %v650, %v676
    %v678 = vrot.slane %v605, %v677
    %v679 = vlaneseq
    %v680 = vshrl.u32 %v679, 7
    %v681 = vsub.s32 %v650, %v680
    %v682 = vrot.slane %v608, %v681
    %v683 = vlaneseq
    %v684 = vshrl.u32 %v683, 7
    %v685 = vsub.s32 %v650, %v684
    %v686 = vrot.slane %v611, %v685
    %v687 = vlaneseq
    %v688 = vshrl.u32 %v687, 7
    %v689 = vsub.s32 %v650, %v688
    %v690 = vrot.slane %v614, %v689
    %v691 = vlaneseq
    %v692 = vshrl.u32 %v691, 7
    %v693 = vsub.s32 %v650, %v692
    %v694 = vrot.slane %v617, %v693
    %v695 = vlaneseq
    %v696 = vshrl.u32 %v695, 7
    %v697 = vsub.s32 %v650, %v696
    %v698 = vrot.slane %v620, %v697
    %v699 = vlaneseq
    %v700 = vshrl.u32 %v699, 7
    %v701 = vsub.s32 %v650, %v700
    %v702 = vrot.slane %v623, %v701
    %v703 = vlaneseq
    %v704 = vshrl.u32 %v703, 7
    %v705 = vsub.s32 %v650, %v704
    %v706 = vrot.slane %v626, %v705
    %v707 = vlaneseq
    %v708 = vshrl.u32 %v707, 7
    %v709 = vsub.s32 %v650, %v708
    %v710 = vrot.slane %v629, %v709
    %v711 = vlaneseq
    %v712 = vshrl.u32 %v711, 7
    %v713 = vsub.s32 %v650, %v712
    %v714 = vrot.slane %v632, %v713
    %vm715 = vcmask 1041409
    %v716 = vsel %vm715, %v658, %v654
    %vm717 = vcmask 1042434
    %v718 = vsel %vm717, %v662, %v716
    %vm719 = vcmask 1043459
    %v720 = vsel %vm719, %v666, %v718
    %vm721 = vcmask 1044484
    %v722 = vsel %vm721, %v670, %v720
    %vm723 = vcmask 1045509
    %v724 = vsel %vm723, %v674, %v722
    %vm725 = vcmask 1046534
    %v726 = vsel %vm725, %v678, %v724
    %vm727 = vcmask 1047559
    %v728 = vsel %vm727, %v682, %v726
    %v729 = vsel %vm715, %v690, %v686
    %v730 = vsel %vm717, %v694, %v729
    %v731 = vsel %vm719, %v698, %v730
    %v732 = vsel %vm721, %v702, %v731
    %v733 = vsel %vm723, %v706, %v732
    %v734 = vsel %vm725, %v710, %v733
    %v735 = vsel %vm727, %v714, %v734
    %vm738 = vcmask 64512
    %v739 = vsel %vm738, %v728, -inf
    %740 = vmax.xlane.f32.xlu0 %v739
    %v741 = vpop.xlane.xlu0 %740
    %v742 = vsel %vm738, %v735, -inf
    %743 = vmax.xlane.f32.xlu0 %v742
    %v744 = vpop.xlane.xlu0 %743
    %v747 = vlaneseq
    %v748 = vshrl.u32 %v747, 7
    %v749 = vsub.s32 0, %v748
    %v750 = vrot.slane %v741, %v749
    %v751 = vlaneseq
    %v752 = vshrl.u32 %v751, 7
    %v753 = vsub.s32 1, %v752
    %v754 = vrot.slane %v741, %v753
    %v755 = vlaneseq
    %v756 = vshrl.u32 %v755, 7
    %v757 = vsub.s32 2, %v756
    %v758 = vrot.slane %v741, %v757
    %v759 = vlaneseq
    %v760 = vshrl.u32 %v759, 7
    %v761 = vsub.s32 3, %v760
    %v762 = vrot.slane %v741, %v761
    %v763 = vlaneseq
    %v764 = vshrl.u32 %v763, 7
    %v765 = vsub.s32 4, %v764
    %v766 = vrot.slane %v741, %v765
    %v767 = vlaneseq
    %v768 = vshrl.u32 %v767, 7
    %v769 = vsub.s32 5, %v768
    %v770 = vrot.slane %v741, %v769
    %v771 = vlaneseq
    %v772 = vshrl.u32 %v771, 7
    %v773 = vsub.s32 6, %v772
    %v774 = vrot.slane %v741, %v773
    %v775 = vlaneseq
    %v776 = vshrl.u32 %v775, 7
    %v777 = vsub.s32 7, %v776
    %v778 = vrot.slane %v741, %v777
    %v779 = vlaneseq
    %v780 = vshrl.u32 %v779, 7
    %v781 = vsub.s32 0, %v780
    %v782 = vrot.slane %v744, %v781
    %v783 = vlaneseq
    %v784 = vshrl.u32 %v783, 7
    %v785 = vsub.s32 1, %v784
    %v786 = vrot.slane %v744, %v785
    %v787 = vlaneseq
    %v788 = vshrl.u32 %v787, 7
    %v789 = vsub.s32 2, %v788
    %v790 = vrot.slane %v744, %v789
    %v791 = vlaneseq
    %v792 = vshrl.u32 %v791, 7
    %v793 = vsub.s32 3, %v792
    %v794 = vrot.slane %v744, %v793
    %v795 = vlaneseq
    %v796 = vshrl.u32 %v795, 7
    %v797 = vsub.s32 4, %v796
    %v798 = vrot.slane %v744, %v797
    %v799 = vlaneseq
    %v800 = vshrl.u32 %v799, 7
    %v801 = vsub.s32 5, %v800
    %v802 = vrot.slane %v744, %v801
    %v803 = vlaneseq
    %v804 = vshrl.u32 %v803, 7
    %v805 = vsub.s32 6, %v804
    %v806 = vrot.slane %v744, %v805
    %v807 = vlaneseq
    %v808 = vshrl.u32 %v807, 7
    %v809 = vsub.s32 7, %v808
    %v810 = vrot.slane %v744, %v809
    %v827 = vsub.f32 %v587, %v750
    %v828 = vsub.f32 %v590, %v754
    %v829 = vsub.f32 %v593, %v758
    %v830 = vsub.f32 %v596, %v762
    %v831 = vsub.f32 %v599, %v766
    %v832 = vsub.f32 %v602, %v770
    %v833 = vsub.f32 %v605, %v774
    %v834 = vsub.f32 %v608, %v778
    %v835 = vsub.f32 %v611, %v782
    %v836 = vsub.f32 %v614, %v786
    %v837 = vsub.f32 %v617, %v790
    %v838 = vsub.f32 %v620, %v794
    %v839 = vsub.f32 %v623, %v798
    %v840 = vsub.f32 %v626, %v802
    %v841 = vsub.f32 %v629, %v806
    %v842 = vsub.f32 %v632, %v810
    %v843 = vmul.f32 %v827, 1.442695
    %v844 = vpow.pop %v843
    %v845 = vmul.f32 %v828, 1.442695
    %v846 = vpow.pop %v845
    %v847 = vmul.f32 %v829, 1.442695
    %v848 = vpow.pop %v847
    %v849 = vmul.f32 %v830, 1.442695
    %v850 = vpow.pop %v849
    %v851 = vmul.f32 %v831, 1.442695
    %v852 = vpow.pop %v851
    %v853 = vmul.f32 %v832, 1.442695
    %v854 = vpow.pop %v853
    %v855 = vmul.f32 %v833, 1.442695
    %v856 = vpow.pop %v855
    %v857 = vmul.f32 %v834, 1.442695
    %v858 = vpow.pop %v857
    %v859 = vmul.f32 %v835, 1.442695
    %v860 = vpow.pop %v859
    %v861 = vmul.f32 %v836, 1.442695
    %v862 = vpow.pop %v861
    %v863 = vmul.f32 %v837, 1.442695
    %v864 = vpow.pop %v863
    %v865 = vmul.f32 %v838, 1.442695
    %v866 = vpow.pop %v865
    %v867 = vmul.f32 %v839, 1.442695
    %v868 = vpow.pop %v867
    %v869 = vmul.f32 %v840, 1.442695
    %v870 = vpow.pop %v869
    %v871 = vmul.f32 %v841, 1.442695
    %v872 = vpow.pop %v871
    %v873 = vmul.f32 %v842, 1.442695
    %v874 = vpow.pop %v873
    %891 = vset.pattern.permute.xlu0 0
    %892 = vperm.xlu0 %891, %v844
    %v893 = vpop.permute.xlu0 %892
    %894 = vset.pattern.permute.xlu0 0
    %895 = vperm.xlu0 %894, %v846
    %v896 = vpop.permute.xlu0 %895
    %897 = vset.pattern.permute.xlu0 0
    %898 = vperm.xlu0 %897, %v848
    %v899 = vpop.permute.xlu0 %898
    %900 = vset.pattern.permute.xlu0 0
    %901 = vperm.xlu0 %900, %v850
    %v902 = vpop.permute.xlu0 %901
    %903 = vset.pattern.permute.xlu0 0
    %904 = vperm.xlu0 %903, %v852
    %v905 = vpop.permute.xlu0 %904
    %906 = vset.pattern.permute.xlu0 0
    %907 = vperm.xlu0 %906, %v854
    %v908 = vpop.permute.xlu0 %907
    %909 = vset.pattern.permute.xlu0 0
    %910 = vperm.xlu0 %909, %v856
    %v911 = vpop.permute.xlu0 %910
    %912 = vset.pattern.permute.xlu0 0
    %913 = vperm.xlu0 %912, %v858
    %v914 = vpop.permute.xlu0 %913
    %915 = vset.pattern.permute.xlu0 0
    %916 = vperm.xlu0 %915, %v860
    %v917 = vpop.permute.xlu0 %916
    %918 = vset.pattern.permute.xlu0 0
    %919 = vperm.xlu0 %918, %v862
    %v920 = vpop.permute.xlu0 %919
    %921 = vset.pattern.permute.xlu0 0
    %922 = vperm.xlu0 %921, %v864
    %v923 = vpop.permute.xlu0 %922
    %924 = vset.pattern.permute.xlu0 0
    %925 = vperm.xlu0 %924, %v866
    %v926 = vpop.permute.xlu0 %925
    %927 = vset.pattern.permute.xlu0 0
    %928 = vperm.xlu0 %927, %v868
    %v929 = vpop.permute.xlu0 %928
    %930 = vset.pattern.permute.xlu0 0
    %931 = vperm.xlu0 %930, %v870
    %v932 = vpop.permute.xlu0 %931
    %933 = vset.pattern.permute.xlu0 0
    %934 = vperm.xlu0 %933, %v872
    %v935 = vpop.permute.xlu0 %934
    %936 = vset.pattern.permute.xlu0 0
    %937 = vperm.xlu0 %936, %v874
    %v938 = vpop.permute.xlu0 %937
    %v939 = vlaneseq
    %v940 = vshrl.u32 %v939, 7
    %v941 = vsub.s32 %v650, %v940
    %v942 = vrot.slane %v893, %v941
    %v943 = vlaneseq
    %v944 = vshrl.u32 %v943, 7
    %v945 = vsub.s32 %v650, %v944
    %v946 = vrot.slane %v896, %v945
    %v947 = vlaneseq
    %v948 = vshrl.u32 %v947, 7
    %v949 = vsub.s32 %v650, %v948
    %v950 = vrot.slane %v899, %v949
    %v951 = vlaneseq
    %v952 = vshrl.u32 %v951, 7
    %v953 = vsub.s32 %v650, %v952
    %v954 = vrot.slane %v902, %v953
    %v955 = vlaneseq
    %v956 = vshrl.u32 %v955, 7
    %v957 = vsub.s32 %v650, %v956
    %v958 = vrot.slane %v905, %v957
    %v959 = vlaneseq
    %v960 = vshrl.u32 %v959, 7
    %v961 = vsub.s32 %v650, %v960
    %v962 = vrot.slane %v908, %v961
    %v963 = vlaneseq
    %v964 = vshrl.u32 %v963, 7
    %v965 = vsub.s32 %v650, %v964
    %v966 = vrot.slane %v911, %v965
    %v967 = vlaneseq
    %v968 = vshrl.u32 %v967, 7
    %v969 = vsub.s32 %v650, %v968
    %v970 = vrot.slane %v914, %v969
    %v971 = vlaneseq
    %v972 = vshrl.u32 %v971, 7
    %v973 = vsub.s32 %v650, %v972
    %v974 = vrot.slane %v917, %v973
    %v975 = vlaneseq
    %v976 = vshrl.u32 %v975, 7
    %v977 = vsub.s32 %v650, %v976
    %v978 = vrot.slane %v920, %v977
    %v979 = vlaneseq
    %v980 = vshrl.u32 %v979, 7
    %v981 = vsub.s32 %v650, %v980
    %v982 = vrot.slane %v923, %v981
    %v983 = vlaneseq
    %v984 = vshrl.u32 %v983, 7
    %v985 = vsub.s32 %v650, %v984
    %v986 = vrot.slane %v926, %v985
    %v987 = vlaneseq
    %v988 = vshrl.u32 %v987, 7
    %v989 = vsub.s32 %v650, %v988
    %v990 = vrot.slane %v929, %v989
    %v991 = vlaneseq
    %v992 = vshrl.u32 %v991, 7
    %v993 = vsub.s32 %v650, %v992
    %v994 = vrot.slane %v932, %v993
    %v995 = vlaneseq
    %v996 = vshrl.u32 %v995, 7
    %v997 = vsub.s32 %v650, %v996
    %v998 = vrot.slane %v935, %v997
    %v999 = vlaneseq
    %v1000 = vshrl.u32 %v999, 7
    %v1001 = vsub.s32 %v650, %v1000
    %v1002 = vrot.slane %v938, %v1001
    %v1003 = vsel %vm715, %v946, %v942
    %v1004 = vsel %vm717, %v950, %v1003
    %v1005 = vsel %vm719, %v954, %v1004
    %v1006 = vsel %vm721, %v958, %v1005
    %v1007 = vsel %vm723, %v962, %v1006
    %v1008 = vsel %vm725, %v966, %v1007
    %v1009 = vsel %vm727, %v970, %v1008
    %v1010 = vsel %vm715, %v978, %v974
    %v1011 = vsel %vm717, %v982, %v1010
    %v1012 = vsel %vm719, %v986, %v1011
    %v1013 = vsel %vm721, %v990, %v1012
    %v1014 = vsel %vm723, %v994, %v1013
    %v1015 = vsel %vm725, %v998, %v1014
    %v1016 = vsel %vm727, %v1002, %v1015
    %v1019 = vsel %vm738, %v1009, 0.0
    %1020 = vadd.xlane.f32.xlu0 %v1019
    %v1021 = vpop.xlane.xlu0 %1020
    %v1022 = vsel %vm738, %v1016, 0.0
    %1023 = vadd.xlane.f32.xlu0 %v1022
    %v1024 = vpop.xlane.xlu0 %1023
    %v1025 = vrcp.pop %v1021
    %v1026 = vrcp.pop %v1024
    %v1029 = vlaneseq
    %v1030 = vshrl.u32 %v1029, 7
    %v1031 = vsub.s32 0, %v1030
    %v1032 = vrot.slane %v1025, %v1031
    %v1033 = vlaneseq
    %v1034 = vshrl.u32 %v1033, 7
    %v1035 = vsub.s32 1, %v1034
    %v1036 = vrot.slane %v1025, %v1035
    %v1037 = vlaneseq
    %v1038 = vshrl.u32 %v1037, 7
    %v1039 = vsub.s32 2, %v1038
    %v1040 = vrot.slane %v1025, %v1039
    %v1041 = vlaneseq
    %v1042 = vshrl.u32 %v1041, 7
    %v1043 = vsub.s32 3, %v1042
    %v1044 = vrot.slane %v1025, %v1043
    %v1045 = vlaneseq
    %v1046 = vshrl.u32 %v1045, 7
    %v1047 = vsub.s32 4, %v1046
    %v1048 = vrot.slane %v1025, %v1047
    %v1049 = vlaneseq
    %v1050 = vshrl.u32 %v1049, 7
    %v1051 = vsub.s32 5, %v1050
    %v1052 = vrot.slane %v1025, %v1051
    %v1053 = vlaneseq
    %v1054 = vshrl.u32 %v1053, 7
    %v1055 = vsub.s32 6, %v1054
    %v1056 = vrot.slane %v1025, %v1055
    %v1057 = vlaneseq
    %v1058 = vshrl.u32 %v1057, 7
    %v1059 = vsub.s32 7, %v1058
    %v1060 = vrot.slane %v1025, %v1059
    %v1061 = vlaneseq
    %v1062 = vshrl.u32 %v1061, 7
    %v1063 = vsub.s32 0, %v1062
    %v1064 = vrot.slane %v1026, %v1063
    %v1065 = vlaneseq
    %v1066 = vshrl.u32 %v1065, 7
    %v1067 = vsub.s32 1, %v1066
    %v1068 = vrot.slane %v1026, %v1067
    %v1069 = vlaneseq
    %v1070 = vshrl.u32 %v1069, 7
    %v1071 = vsub.s32 2, %v1070
    %v1072 = vrot.slane %v1026, %v1071
    %v1073 = vlaneseq
    %v1074 = vshrl.u32 %v1073, 7
    %v1075 = vsub.s32 3, %v1074
    %v1076 = vrot.slane %v1026, %v1075
    %v1077 = vlaneseq
    %v1078 = vshrl.u32 %v1077, 7
    %v1079 = vsub.s32 4, %v1078
    %v1080 = vrot.slane %v1026, %v1079
    %v1081 = vlaneseq
    %v1082 = vshrl.u32 %v1081, 7
    %v1083 = vsub.s32 5, %v1082
    %v1084 = vrot.slane %v1026, %v1083
    %v1085 = vlaneseq
    %v1086 = vshrl.u32 %v1085, 7
    %v1087 = vsub.s32 6, %v1086
    %v1088 = vrot.slane %v1026, %v1087
    %v1089 = vlaneseq
    %v1090 = vshrl.u32 %v1089, 7
    %v1091 = vsub.s32 7, %v1090
    %v1092 = vrot.slane %v1026, %v1091
    %v1109 = vmul.f32 %v844, %v1032
    %v1110 = vmul.f32 %v846, %v1036
    %v1111 = vmul.f32 %v848, %v1040
    %v1112 = vmul.f32 %v850, %v1044
    %v1113 = vmul.f32 %v852, %v1048
    %v1114 = vmul.f32 %v854, %v1052
    %v1115 = vmul.f32 %v856, %v1056
    %v1116 = vmul.f32 %v858, %v1060
    %v1117 = vmul.f32 %v860, %v1064
    %v1118 = vmul.f32 %v862, %v1068
    %v1119 = vmul.f32 %v864, %v1072
    %v1120 = vmul.f32 %v866, %v1076
    %v1121 = vmul.f32 %v868, %v1080
    %v1122 = vmul.f32 %v870, %v1084
    %v1123 = vmul.f32 %v872, %v1088
    %v1124 = vmul.f32 %v874, %v1092
    %1141 = vset.pattern.permute.xlu0 0
    %1142 = vperm.xlu0 %1141, %v1109
    %v1143 = vpop.permute.xlu0 %1142
    %1144 = vset.pattern.permute.xlu0 0
    %1145 = vperm.xlu0 %1144, %v1110
    %v1146 = vpop.permute.xlu0 %1145
    %1147 = vset.pattern.permute.xlu0 0
    %1148 = vperm.xlu0 %1147, %v1111
    %v1149 = vpop.permute.xlu0 %1148
    %1150 = vset.pattern.permute.xlu0 0
    %1151 = vperm.xlu0 %1150, %v1112
    %v1152 = vpop.permute.xlu0 %1151
    %1153 = vset.pattern.permute.xlu0 0
    %1154 = vperm.xlu0 %1153, %v1113
    %v1155 = vpop.permute.xlu0 %1154
    %1156 = vset.pattern.permute.xlu0 0
    %1157 = vperm.xlu0 %1156, %v1114
    %v1158 = vpop.permute.xlu0 %1157
    %1159 = vset.pattern.permute.xlu0 0
    %1160 = vperm.xlu0 %1159, %v1115
    %v1161 = vpop.permute.xlu0 %1160
    %1162 = vset.pattern.permute.xlu0 0
    %1163 = vperm.xlu0 %1162, %v1116
    %v1164 = vpop.permute.xlu0 %1163
    %1165 = vset.pattern.permute.xlu0 0
    %1166 = vperm.xlu0 %1165, %v1117
    %v1167 = vpop.permute.xlu0 %1166
    %1168 = vset.pattern.permute.xlu0 0
    %1169 = vperm.xlu0 %1168, %v1118
    %v1170 = vpop.permute.xlu0 %1169
    %1171 = vset.pattern.permute.xlu0 0
    %1172 = vperm.xlu0 %1171, %v1119
    %v1173 = vpop.permute.xlu0 %1172
    %1174 = vset.pattern.permute.xlu0 0
    %1175 = vperm.xlu0 %1174, %v1120
    %v1176 = vpop.permute.xlu0 %1175
    %1177 = vset.pattern.permute.xlu0 0
    %1178 = vperm.xlu0 %1177, %v1121
    %v1179 = vpop.permute.xlu0 %1178
    %1180 = vset.pattern.permute.xlu0 0
    %1181 = vperm.xlu0 %1180, %v1122
    %v1182 = vpop.permute.xlu0 %1181
    %1183 = vset.pattern.permute.xlu0 0
    %1184 = vperm.xlu0 %1183, %v1123
    %v1185 = vpop.permute.xlu0 %1184
    %1186 = vset.pattern.permute.xlu0 0
    %1187 = vperm.xlu0 %1186, %v1124
    %v1188 = vpop.permute.xlu0 %1187
    %v1189 = vlaneseq
    %v1190 = vshrl.u32 %v1189, 7
    %v1191 = vsub.s32 %v650, %v1190
    %v1192 = vrot.slane %v1143, %v1191
    %v1193 = vlaneseq
    %v1194 = vshrl.u32 %v1193, 7
    %v1195 = vsub.s32 %v650, %v1194
    %v1196 = vrot.slane %v1146, %v1195
    %v1197 = vlaneseq
    %v1198 = vshrl.u32 %v1197, 7
    %v1199 = vsub.s32 %v650, %v1198
    %v1200 = vrot.slane %v1149, %v1199
    %v1201 = vlaneseq
    %v1202 = vshrl.u32 %v1201, 7
    %v1203 = vsub.s32 %v650, %v1202
    %v1204 = vrot.slane %v1152, %v1203
    %v1205 = vlaneseq
    %v1206 = vshrl.u32 %v1205, 7
    %v1207 = vsub.s32 %v650, %v1206
    %v1208 = vrot.slane %v1155, %v1207
    %v1209 = vlaneseq
    %v1210 = vshrl.u32 %v1209, 7
    %v1211 = vsub.s32 %v650, %v1210
    %v1212 = vrot.slane %v1158, %v1211
    %v1213 = vlaneseq
    %v1214 = vshrl.u32 %v1213, 7
    %v1215 = vsub.s32 %v650, %v1214
    %v1216 = vrot.slane %v1161, %v1215
    %v1217 = vlaneseq
    %v1218 = vshrl.u32 %v1217, 7
    %v1219 = vsub.s32 %v650, %v1218
    %v1220 = vrot.slane %v1164, %v1219
    %v1221 = vlaneseq
    %v1222 = vshrl.u32 %v1221, 7
    %v1223 = vsub.s32 %v650, %v1222
    %v1224 = vrot.slane %v1167, %v1223
    %v1225 = vlaneseq
    %v1226 = vshrl.u32 %v1225, 7
    %v1227 = vsub.s32 %v650, %v1226
    %v1228 = vrot.slane %v1170, %v1227
    %v1229 = vlaneseq
    %v1230 = vshrl.u32 %v1229, 7
    %v1231 = vsub.s32 %v650, %v1230
    %v1232 = vrot.slane %v1173, %v1231
    %v1233 = vlaneseq
    %v1234 = vshrl.u32 %v1233, 7
    %v1235 = vsub.s32 %v650, %v1234
    %v1236 = vrot.slane %v1176, %v1235
    %v1237 = vlaneseq
    %v1238 = vshrl.u32 %v1237, 7
    %v1239 = vsub.s32 %v650, %v1238
    %v1240 = vrot.slane %v1179, %v1239
    %v1241 = vlaneseq
    %v1242 = vshrl.u32 %v1241, 7
    %v1243 = vsub.s32 %v650, %v1242
    %v1244 = vrot.slane %v1182, %v1243
    %v1245 = vlaneseq
    %v1246 = vshrl.u32 %v1245, 7
    %v1247 = vsub.s32 %v650, %v1246
    %v1248 = vrot.slane %v1185, %v1247
    %v1249 = vlaneseq
    %v1250 = vshrl.u32 %v1249, 7
    %v1251 = vsub.s32 %v650, %v1250
    %v1252 = vrot.slane %v1188, %v1251
    %v1253 = vsel %vm715, %v1196, %v1192
    %v1254 = vsel %vm717, %v1200, %v1253
    %v1255 = vsel %vm719, %v1204, %v1254
    %v1256 = vsel %vm721, %v1208, %v1255
    %v1257 = vsel %vm723, %v1212, %v1256
    %v1258 = vsel %vm725, %v1216, %v1257
    %v1259 = vsel %vm727, %v1220, %v1258
    %v1260 = vsel %vm715, %v1228, %v1224
    %v1261 = vsel %vm717, %v1232, %v1260
    %v1262 = vsel %vm719, %v1236, %v1261
    %v1263 = vsel %vm721, %v1240, %v1262
    %v1264 = vsel %vm723, %v1244, %v1263
    %v1265 = vsel %vm725, %v1248, %v1264
    %v1266 = vsel %vm727, %v1252, %v1265
    %1269 = vst.msk [vmem:[%s7] sm:$0xff] %vm738, %v1259
    %1270 = vst.msk [vmem:[%s7 + $0x8] sm:$0xff] %vm738, %v1266
    %v1271 = vunpack.c.l.bf16 %v84
    %v1272 = vunpack.c.l.bf16 %v85
    %v1273 = vunpack.c.l.bf16 %v86
    %v1274 = vunpack.c.l.bf16 %v87
    %v1275 = vunpack.c.l.bf16 %v88
    %v1276 = vunpack.c.l.bf16 %v89
    %v1277 = vunpack.c.l.bf16 %v90
    %v1278 = vunpack.c.l.bf16 %v91
    %v1279 = vunpack.c.l.bf16 %v92
    %v1280 = vunpack.c.l.bf16 %v93
    %v1281 = vunpack.c.l.bf16 %v94
    %v1282 = vunpack.c.l.bf16 %v95
    %v1283 = vunpack.c.l.bf16 %v96
    %v1284 = vunpack.c.l.bf16 %v97
    %v1285 = vunpack.c.l.bf16 %v98
    %v1286 = vunpack.c.l.bf16 %v99
    %v1303 = vmul.f32 %v1143, %v1271
    %v1304 = vmul.f32 %v1146, %v1272
    %v1305 = vmul.f32 %v1149, %v1273
    %v1306 = vmul.f32 %v1152, %v1274
    %v1307 = vmul.f32 %v1155, %v1275
    %v1308 = vmul.f32 %v1158, %v1276
    %v1309 = vmul.f32 %v1161, %v1277
    %v1310 = vmul.f32 %v1164, %v1278
    %v1311 = vmul.f32 %v1167, %v1279
    %v1312 = vmul.f32 %v1170, %v1280
    %v1313 = vmul.f32 %v1173, %v1281
    %v1314 = vmul.f32 %v1176, %v1282
    %v1315 = vmul.f32 %v1179, %v1283
    %v1316 = vmul.f32 %v1182, %v1284
    %v1317 = vmul.f32 %v1185, %v1285
    %v1318 = vmul.f32 %v1188, %v1286
    %v1319 = vsel %vm128, %v1303, 0.0
    %v1320 = vrot.slane %v1319, 4
    %v1321 = vadd.f32 %v1319, %v1320
    %v1322 = vrot.slane %v1321, 2
    %v1323 = vadd.f32 %v1321, %v1322
    %v1324 = vrot.slane %v1323, 1
    %v1325 = vadd.f32 %v1323, %v1324
    %v1326 = vsel %vm128, %v1304, 0.0
    %v1327 = vrot.slane %v1326, 4
    %v1328 = vadd.f32 %v1326, %v1327
    %v1329 = vrot.slane %v1328, 2
    %v1330 = vadd.f32 %v1328, %v1329
    %v1331 = vrot.slane %v1330, 1
    %v1332 = vadd.f32 %v1330, %v1331
    %v1333 = vsel %vm128, %v1305, 0.0
    %v1334 = vrot.slane %v1333, 4
    %v1335 = vadd.f32 %v1333, %v1334
    %v1336 = vrot.slane %v1335, 2
    %v1337 = vadd.f32 %v1335, %v1336
    %v1338 = vrot.slane %v1337, 1
    %v1339 = vadd.f32 %v1337, %v1338
    %v1340 = vsel %vm128, %v1306, 0.0
    %v1341 = vrot.slane %v1340, 4
    %v1342 = vadd.f32 %v1340, %v1341
    %v1343 = vrot.slane %v1342, 2
    %v1344 = vadd.f32 %v1342, %v1343
    %v1345 = vrot.slane %v1344, 1
    %v1346 = vadd.f32 %v1344, %v1345
    %v1347 = vsel %vm128, %v1307, 0.0
    %v1348 = vrot.slane %v1347, 4
    %v1349 = vadd.f32 %v1347, %v1348
    %v1350 = vrot.slane %v1349, 2
    %v1351 = vadd.f32 %v1349, %v1350
    %v1352 = vrot.slane %v1351, 1
    %v1353 = vadd.f32 %v1351, %v1352
    %v1354 = vsel %vm128, %v1308, 0.0
    %v1355 = vrot.slane %v1354, 4
    %v1356 = vadd.f32 %v1354, %v1355
    %v1357 = vrot.slane %v1356, 2
    %v1358 = vadd.f32 %v1356, %v1357
    %v1359 = vrot.slane %v1358, 1
    %v1360 = vadd.f32 %v1358, %v1359
    %v1361 = vsel %vm128, %v1309, 0.0
    %v1362 = vrot.slane %v1361, 4
    %v1363 = vadd.f32 %v1361, %v1362
    %v1364 = vrot.slane %v1363, 2
    %v1365 = vadd.f32 %v1363, %v1364
    %v1366 = vrot.slane %v1365, 1
    %v1367 = vadd.f32 %v1365, %v1366
    %v1368 = vsel %vm128, %v1310, 0.0
    %v1369 = vrot.slane %v1368, 4
    %v1370 = vadd.f32 %v1368, %v1369
    %v1371 = vrot.slane %v1370, 2
    %v1372 = vadd.f32 %v1370, %v1371
    %v1373 = vrot.slane %v1372, 1
    %v1374 = vadd.f32 %v1372, %v1373
    %v1375 = vsel %vm128, %v1311, 0.0
    %v1376 = vrot.slane %v1375, 4
    %v1377 = vadd.f32 %v1375, %v1376
    %v1378 = vrot.slane %v1377, 2
    %v1379 = vadd.f32 %v1377, %v1378
    %v1380 = vrot.slane %v1379, 1
    %v1381 = vadd.f32 %v1379, %v1380
    %v1382 = vsel %vm128, %v1312, 0.0
    %v1383 = vrot.slane %v1382, 4
    %v1384 = vadd.f32 %v1382, %v1383
    %v1385 = vrot.slane %v1384, 2
    %v1386 = vadd.f32 %v1384, %v1385
    %v1387 = vrot.slane %v1386, 1
    %v1388 = vadd.f32 %v1386, %v1387
    %v1389 = vsel %vm128, %v1313, 0.0
    %v1390 = vrot.slane %v1389, 4
    %v1391 = vadd.f32 %v1389, %v1390
    %v1392 = vrot.slane %v1391, 2
    %v1393 = vadd.f32 %v1391, %v1392
    %v1394 = vrot.slane %v1393, 1
    %v1395 = vadd.f32 %v1393, %v1394
    %v1396 = vsel %vm128, %v1314, 0.0
    %v1397 = vrot.slane %v1396, 4
    %v1398 = vadd.f32 %v1396, %v1397
    %v1399 = vrot.slane %v1398, 2
    %v1400 = vadd.f32 %v1398, %v1399
    %v1401 = vrot.slane %v1400, 1
    %v1402 = vadd.f32 %v1400, %v1401
    %v1403 = vsel %vm128, %v1315, 0.0
    %v1404 = vrot.slane %v1403, 4
    %v1405 = vadd.f32 %v1403, %v1404
    %v1406 = vrot.slane %v1405, 2
    %v1407 = vadd.f32 %v1405, %v1406
    %v1408 = vrot.slane %v1407, 1
    %v1409 = vadd.f32 %v1407, %v1408
    %v1410 = vsel %vm128, %v1316, 0.0
    %v1411 = vrot.slane %v1410, 4
    %v1412 = vadd.f32 %v1410, %v1411
    %v1413 = vrot.slane %v1412, 2
    %v1414 = vadd.f32 %v1412, %v1413
    %v1415 = vrot.slane %v1414, 1
    %v1416 = vadd.f32 %v1414, %v1415
    %v1417 = vsel %vm128, %v1317, 0.0
    %v1418 = vrot.slane %v1417, 4
    %v1419 = vadd.f32 %v1417, %v1418
    %v1420 = vrot.slane %v1419, 2
    %v1421 = vadd.f32 %v1419, %v1420
    %v1422 = vrot.slane %v1421, 1
    %v1423 = vadd.f32 %v1421, %v1422
    %v1424 = vsel %vm128, %v1318, 0.0
    %v1425 = vrot.slane %v1424, 4
    %v1426 = vadd.f32 %v1424, %v1425
    %v1427 = vrot.slane %v1426, 2
    %v1428 = vadd.f32 %v1426, %v1427
    %v1429 = vrot.slane %v1428, 1
    %v1430 = vadd.f32 %v1428, %v1429
    %v1447 = vsel %vm715, %v1332, %v1325
    %v1448 = vsel %vm717, %v1339, %v1447
    %v1449 = vsel %vm719, %v1346, %v1448
    %v1450 = vsel %vm721, %v1353, %v1449
    %v1451 = vsel %vm723, %v1360, %v1450
    %v1452 = vsel %vm725, %v1367, %v1451
    %v1453 = vsel %vm727, %v1374, %v1452
    %v1454 = vsel %vm715, %v1388, %v1381
    %v1455 = vsel %vm717, %v1395, %v1454
    %v1456 = vsel %vm719, %v1402, %v1455
    %v1457 = vsel %vm721, %v1409, %v1456
    %v1458 = vsel %vm723, %v1416, %v1457
    %v1459 = vsel %vm725, %v1423, %v1458
    %v1460 = vsel %vm727, %v1430, %v1459
    %1463 = vst.msk [vmem:[#allocation10] sm:$0xff] %vm128, %v1453
    %1464 = vst.msk [vmem:[#allocation10 + $0x8] sm:$0xff] %vm128, %v1460
    // Predicated region
    $region42: #{tpu_custom_call.1} parent=1 // pred_check
      _
    $region43: #{tpu_custom_call.1} parent=1 // pred_check_branch
      %1466 = sbr.rel (0) target = $region45
    $region44: #{tpu_custom_call.1} parent=1 // pred_region
      %s1468 = ssub.s32 256, 256
      %1469 = vsyncadd [#allocation4], %s1468
      %s1470 = sshll.u32 [#allocation10], 4
      %s1471 = int_to_ptr.vmem [resolvable:$true] %s1470
      %1476 = dma.vmem_to_hbm [thread:$0]  %s1471, 256, %s6, [#allocation4], 128, 128, 8
    $region45: #{tpu_custom_call.1} parent=1 // pred_fallthru
      _
    // Predicated region
    $region46: #{tpu_custom_call.1} parent=1 // pred_check
      _
    $region47: #{tpu_custom_call.1} parent=1 // pred_check_branch
      %1478 = sbr.rel (0) target = $region49
    $region48: #{tpu_custom_call.1} parent=1 // pred_region
      _
    $region49: #{tpu_custom_call.1} parent=1 // pred_fallthru
      _
    // Predicated region
    $region50: #{tpu_custom_call.1} parent=1 // pred_check
      _
    $region51: #{tpu_custom_call.1} parent=1 // pred_check_branch
      %1480 = sbr.rel (0) target = $region53
    $region52: #{tpu_custom_call.1} parent=1 // pred_region
      %1481 = dma.done [#allocation4], 256
    $region53: #{tpu_custom_call.1} parent=1 // pred_fallthru
      _
    // Predicated region
    $region54: #{tpu_custom_call.1} parent=1 // pred_check
      _
    $region55: #{tpu_custom_call.1} parent=1 // pred_check_branch
      %1483 = sbr.rel (0) target = $region57
    $region56: #{tpu_custom_call.1} parent=1 // pred_region
      _
    $region57: #{tpu_custom_call.1} parent=1 // pred_fallthru
      _
    %1484 = vsyncpa [#allocation3], 1
    %1485 = vsyncpa [#allocation6], 1
    %1486 = vsyncpa [#allocation9], 1
    %1487 = vsyncpa [#allocation4], 1

</llo_original>
